<compile_context>
chip_gen: v7x
topology: tpu7x:2x2x1
jax: 0.10.0
libtpu: 0.0.40
codegen_flags: <defaults>
</compile_context>

<pallas_src>
import functools

import jax
import jax.numpy as jnp
from jax import lax
from jax.experimental import pallas as pl
from jax.experimental.pallas import tpu as pltpu


def _round_up(x, m):
    return ((x + m - 1) // m) * m


# ----------------------------- Pallas kernel ------------------------------ #
def _fpmc_score_kernel(emb_ref, il_t_ref, out_ref):
    # emb_ref : (tm, D)  bf16   last-click item embedding tile (resident over j)
    # il_t_ref: (D, tn)  bf16   lane-dense pre-transposed item table tile
    # out_ref : (tm, tn) bf16   score tile (f32 accumulation on the MXU)
    out_ref[...] = jnp.dot(
        emb_ref[...], il_t_ref[...], preferred_element_type=jnp.float32
    ).astype(out_ref.dtype)


def fpmc_scores(item_seq_emb, il_emb_t, *, tile_m=256, tile_n=4096):
    """score = item_seq_emb @ IL_emb.T, with IL_emb pre-transposed to (D, N_pad).

    item_seq_emb : (B, D)      bf16 last-click embeddings
    il_emb_t     : (D, N_pad)  bf16 pre-transposed item table, N_pad % tile_n == 0
    returns      : (B_pad, N_pad) bf16 scores (padding NOT sliced off here)
    """
    B, D = item_seq_emb.shape
    D2, N = il_emb_t.shape
    assert D == D2
    assert tile_m % 16 == 0, "tile_m must be a multiple of 16 (bf16 sublane packing)"
    assert N % 128 == 0, "pad the item table to a multiple of 128 at init"

    # Batch tiling: pad B up to a multiple of the batch tile (bf16 sublane = 16).
    tm = min(tile_m, _round_up(B, 16))
    B_pad = _round_up(B, tm)
    if B_pad != B:
        item_seq_emb = jnp.pad(item_seq_emb, ((0, B_pad - B), (0, 0)))

    # Item tiling: table is padded at init to a multiple of tile_n, so the
    # tile never collapses to a tiny width.
    tn = min(tile_n, N)
    assert tn % 128 == 0 and N % tn == 0, (
        "pad the item table to a multiple of tile_n at init"
    )

    grid_m = B_pad // tm
    # v7x megacore: make sure at least one "parallel" grid axis has >= 2 tiles.
    if grid_m == 1 and N // tn == 1 and N % 256 == 0:
        tn //= 2
    grid = (grid_m, N // tn)

    out_dtype = jnp.bfloat16
    cost = pl.CostEstimate(
        flops=2 * B_pad * N * D,
        transcendentals=0,
        bytes_accessed=(
            B_pad * D * jnp.dtype(item_seq_emb.dtype).itemsize
            + N * D * jnp.dtype(il_emb_t.dtype).itemsize
            + B_pad * N * jnp.dtype(out_dtype).itemsize
        ),
    )

    emb_spec = pl.BlockSpec((tm, D), lambda i, j: (i, 0))   # reused over j
    il_spec = pl.BlockSpec((D, tn), lambda i, j: (0, j))    # lane-dense stream
    out_spec = pl.BlockSpec((tm, tn), lambda i, j: (i, j))  # lane-dense output

    return pl.pallas_call(
        _fpmc_score_kernel,
        out_shape=jax.ShapeDtypeStruct((B_pad, N), out_dtype),
        grid_spec=pltpu.PrefetchScalarGridSpec(
            num_scalar_prefetch=0,
            grid=grid,
            in_specs=[emb_spec, il_spec],
            out_specs=out_spec,
        ),
        compiler_params=pltpu.CompilerParams(
            dimension_semantics=("parallel", "parallel"),
        ),
        cost_estimate=cost,
    )(item_seq_emb, il_emb_t)


# ------------------------------ FPMC forward ------------------------------- #
@functools.partial(jax.jit, static_argnames=("n_items",))
def fpmc_forward(li_emb, il_emb_t_padded, seq, lengths, *, n_items):
    # seq: (seq_len, batch) int32, lengths: (batch,) int32
    seq_bt = seq.T                                        # (batch, seq_len)
    B = seq_bt.shape[0]
    # Guard lengths == 0 (would otherwise wrap); clamp to the first timestep.
    last_idx = jnp.maximum(lengths - 1, 0)
    item_last_click = jnp.take_along_axis(
        seq_bt, last_idx[:, None], axis=1
    )[:, 0]                                               # (batch,)
    # TODO(synk): for very large batches, fuse this row gather into the
    # pallas_call via num_scalar_prefetch + pl.Element block; kept as XLA glue.
    item_seq_emb = li_emb[item_last_click]                # (batch, D) bf16
    scores = fpmc_scores(item_seq_emb, il_emb_t_padded)   # (B_pad, N_pad) bf16
    # Slice exactly once, and only if padding was actually added.
    if scores.shape[0] != B or scores.shape[1] != n_items:
        scores = scores[:B, :n_items]
    return scores                                         # (batch, n_items) bf16


class FPMCPallas:
    def __init__(self, n_items, embedding_size, key, *, item_pad_multiple=4096):
        self.n_items = n_items + 1  # matches PyTorch: n_items + 1 (padding row)
        self.embedding_size = embedding_size
        k1, k2 = jax.random.split(key)
        # xavier_normal_: std = sqrt(2 / (fan_in + fan_out))
        std = (2.0 / (self.n_items + embedding_size)) ** 0.5
        # Note: in the PyTorch module, apply(_init_weights) re-inits the whole
        # LI_emb weight (including padding_idx=0 row) with xavier_normal_,
        # so we do NOT zero the padding row here.
        li = std * jax.random.normal(k1, (self.n_items, embedding_size), jnp.float32)
        il = std * jax.random.normal(k2, (self.n_items, embedding_size), jnp.float32)
        # bf16 storage: halves the HBM stream of the item table; MXU is
        # natively bf16 and accumulation stays f32 in the kernel.
        self.LI_emb = li.astype(jnp.bfloat16)
        # Pad the scored item table once at init to a multiple of the item
        # tile (padded rows are zero; their scores are sliced off in forward),
        # and store it PRE-TRANSPOSED (D, N_pad) so the streamed kernel tile is
        # lane-dense and MXU-shaped.  One-time cost, free per forward.
        self.n_items_padded = _round_up(self.n_items, item_pad_multiple)
        il_padded = jnp.pad(il, ((0, self.n_items_padded - self.n_items), (0, 0)))
        self.IL_emb_T = il_padded.T.astype(jnp.bfloat16)   # (D, N_pad)

    def forward(self, seq, lengths):
        return fpmc_forward(
            self.LI_emb, self.IL_emb_T, seq, lengths, n_items=self.n_items
        )


# --------------------------------- main ------------------------------------ #
if __name__ == "__main__":
    key = jax.random.PRNGKey(0)
    k_model, k_seq, k_len = jax.random.split(key, 3)

    n_items_raw = 150          # -> model.n_items = 151, padded to 4096 for the kernel
    embedding_dim = 32
    batch = 6                  # exercises batch padding (6 -> 16)
    seq_len = 8

    model = FPMCPallas(n_items_raw, embedding_dim, k_model)

    # seq is time-major (seq_len, batch), item ids in [1, n_items_raw]
    seq = jax.random.randint(
        k_seq, (seq_len, batch), minval=1, maxval=n_items_raw + 1, dtype=jnp.int32
    )
    lengths = jax.random.randint(
        k_len, (batch,), minval=1, maxval=seq_len + 1, dtype=jnp.int32
    )

    score = model.forward(seq, lengths)
    jax.block_until_ready(score)
    assert score.shape == (batch, n_items_raw + 1)
    assert score.dtype == jnp.bfloat16

    # Reference check in plain JAX (f32 math on the same bf16 parameters).
    # The kernel output is bf16, so tolerance accounts for one bf16 rounding
    # of the f32-accumulated result (~2^-8 relative).
    seq_bt = seq.T
    last = jnp.take_along_axis(seq_bt, jnp.maximum(lengths - 1, 0)[:, None], axis=1)[:, 0]
    li_f32 = model.LI_emb.astype(jnp.float32)
    il_t_f32 = model.IL_emb_T.astype(jnp.float32)[:, : model.n_items]   # (D, n_items)
    ref = jnp.dot(li_f32[last], il_t_f32, precision=jax.lax.Precision.HIGHEST)
    assert jnp.allclose(score.astype(jnp.float32), ref, atol=2e-3, rtol=2e-2)

    print("KERNEL_OK")
</pallas_src>

<mosaic_0001>
module attributes {stable_mosaic.version = 11 : i64} {
  func.func @_fpmc_score_kernel(%arg0: i32, %arg1: i32, %arg2: memref<16x32xbf16, #tpu.memory_space<vmem>>, %arg3: memref<32x2048xbf16, #tpu.memory_space<vmem>>, %arg4: memref<16x2048xbf16, #tpu.memory_space<vmem>>) attributes {dimension_semantics = [#tpu.dimension_semantics<parallel>, #tpu.dimension_semantics<parallel>], iteration_bounds = array<i64: 1, 2>, scalar_prefetch = 0 : i64, scratch_operands = 0 : i64, tpu.core_type = #tpu.core_type<tc>, window_params = [{transform_indices = @transform_0, window_bounds = array<i64: 16, 32>}, {transform_indices = @transform_1, window_bounds = array<i64: 32, 2048>}, {transform_indices = @transform_2, window_bounds = array<i64: 16, 2048>}]} {
    %c0 = arith.constant 0 : index
    %c0_0 = arith.constant 0 : index
    %0 = vector.load %arg2[%c0, %c0_0] : memref<16x32xbf16, #tpu.memory_space<vmem>>, vector<16x32xbf16>
    %c0_1 = arith.constant 0 : index
    %c0_2 = arith.constant 0 : index
    %1 = vector.load %arg3[%c0_1, %c0_2] : memref<32x2048xbf16, #tpu.memory_space<vmem>>, vector<32x2048xbf16>
    %cst = arith.constant dense<0.000000e+00> : vector<16x2048xf32>
    %2 = tpu.matmul %0, %1, %cst {dimension_numbers = #tpu.dot_dimension_numbers<[1], [0], [0], [1], [0, 0, 1, 1], [], []>} : vector<16x32xbf16>, vector<32x2048xbf16>, vector<16x2048xf32> -> vector<16x2048xf32>
    %3 = arith.truncf %2 : vector<16x2048xf32> to vector<16x2048xbf16>
    %c0_3 = arith.constant 0 : index
    %c0_4 = arith.constant 0 : index
    %4 = vector.load %arg4[%c0_3, %c0_4] : memref<16x2048xbf16, #tpu.memory_space<vmem>>, vector<16x2048xbf16>
    tpu.vector_store %arg4[%c0_3, %c0_4], %3 {strides = array<i32>} : memref<16x2048xbf16, #tpu.memory_space<vmem>>, vector<16x2048xbf16>,
    return
  }
  func.func @transform_0(%arg0: i32, %arg1: i32) -> (i32, i32) {
    %c0_i32 = arith.constant 0 : i32
    %c0_i32_0 = arith.constant 0 : i32
    return %arg0, %c0_i32 : i32, i32
  }
  func.func @transform_1(%arg0: i32, %arg1: i32) -> (i32, i32) {
    %c0_i32 = arith.constant 0 : i32
    %c0_i32_0 = arith.constant 0 : i32
    return %c0_i32, %arg1 : i32, i32
  }
  func.func @transform_2(%arg0: i32, %arg1: i32) -> (i32, i32) {
    %c0_i32 = arith.constant 0 : i32
    return %arg0, %arg1 : i32, i32
  }
}

</mosaic_0001>

<llo_original>
// kernel: fpmc_forward.1
$region0: #{fpmc_forward.1}
  #allocation0 [shape = 'u32[]', space=smem, size = 0x4, offset = 0x4, fixed_abs, tag = 'smem constant byte address 0x4 - core index']
  #allocation1 [shape = 'u32[144,128]{1,0:T(1,128)}', space=vmem, size = 0x12000, scoped, tag = 'internal scratch']
  %s0 = inlined_call_operand.vmem [shape: bf16[16,32], index: 0, kind: input, shape index: {}]
  %s1 = inlined_call_operand.vmem [shape: bf16[32,4096], index: 1, kind: input, shape index: {}]
  %s2 = inlined_call_operand.vmem [shape: bf16[16,4096], index: 2, kind: output, shape index: {}]
  %s3 = sld [smem:[#allocation0]]
  $region83: #{fpmc_forward.1} parent=0
    _
  %s5 = ssub.s32 1, %s3
  %s6 = scalar_select 0, %s5, %s3
  $region1: #{fpmc_forward.1} parent=0
    #allocation2 [shape = 'u8[262144]{0}', space=vmem, size = 0x40000, scoped, tag = 'input window, operand 1']
    #allocation3 [shape = 'u8[131072]{0}', space=vmem, size = 0x20000, scoped, tag = 'output window, operand 0']
    loop: start=0, step=1, limit=4
    $region2: #{fpmc_forward.1} parent=1 // loop_pre_header
      _
    $region3: #{fpmc_forward.1} parent=1 // loop_header
      %s8 = sphi 0, %s12
      %p9 = scmp.ge.s32.totalorder %s8, 4
      %s15 = sphi 0, %s27
      %s16 = sphi 0, %s23
      %s17 = sphi 0, %s15
      %s18 = sphi 0, %s16
      %s19 = sphi 0, %s17
      %s20 = sphi 0, %s18
      %s30 = sphi 0, %s32
      %s33 = sphi 0, %s30
      %s34 = sphi 0, %s33
      %s50 = sphi 0, %s34
      %s56 = sphi 0, %s58
      %s59 = sphi 0, %s56
      %s60 = sphi 0, %s59
      %s76 = sphi 0, %s60
      %s84 = sphi 0, %s86
      %s87 = sphi 0, %s84
      %s88 = sphi 0, %s87
      %s104 = sphi 0, %s88
    $region4: #{fpmc_forward.1} parent=1 // loop_header_branch
      %11 = sbr.rel (%p9) target = $region8
    $region5: #{fpmc_forward.1} parent=1 // loop_body
      %s13 = ssub.s32 %s8, 1
      %s14 = ssub.s32 %s8, 2
      %s21 = sadd.s32 1, %s16
      %p22 = scmp.ge.s32.totalorder %s21, 2
      %s23 = scalar_select %p22, 0, %s21
      %s24 = sadd.s32 1, %s15
      %s25 = scalar_select %p22, %s24, %s15
      %p26 = scmp.ge.s32.totalorder %s25, 1
      %s27 = scalar_select %p26, 0, %s25
      %s28 = ssub.s32 %s15, %s27
      %p29 = scmp.eq.s32.totalorder %s28, 0
      %s31 = sadd.s32 %s30, 1
      %s32 = scalar_select %p29, %s30, %s31
      %p35 = pneg %p29
      %p36 = scmp.eq.s32.totalorder %s8, 1
      %p37 = por %p35, %p36
      %p38 = scmp.ne.s32.totalorder %s30, %s33
      %p39 = scmp.eq.s32.totalorder %s8, 0
      %p40 = por %p38, %p39
      %p41 = scmp.ne.s32.totalorder %s30, %s33
      %p42 = scmp.eq.s32.totalorder %s13, 1
      %p43 = por %p41, %p42
      %p44 = scmp.ne.s32.totalorder %s33, %s34
      %p45 = scmp.eq.s32.totalorder %s13, 0
      %p46 = por %p44, %p45
      %p47 = scmp.ne.s32.totalorder %s33, %s34
      %p48 = scmp.eq.s32.totalorder %s14, 1
      %p49 = por %p47, %p48
      %p51 = scmp.ne.s32.totalorder %s34, %s50
      %p52 = scmp.eq.s32.totalorder %s14, 0
      %p53 = por %p51, %p52
      %s54 = ssub.s32 %s16, %s23
      %p55 = scmp.eq.s32.totalorder %s54, 0
      %s57 = sadd.s32 %s56, 1
      %s58 = scalar_select %p55, %s56, %s57
      %p61 = pneg %p55
      %p62 = scmp.eq.s32.totalorder %s8, 1
      %p63 = por %p61, %p62
      %p64 = scmp.ne.s32.totalorder %s56, %s59
      %p65 = scmp.eq.s32.totalorder %s8, 0
      %p66 = por %p64, %p65
      %p67 = scmp.ne.s32.totalorder %s56, %s59
      %p68 = scmp.eq.s32.totalorder %s13, 1
      %p69 = por %p67, %p68
      %p70 = scmp.ne.s32.totalorder %s59, %s60
      %p71 = scmp.eq.s32.totalorder %s13, 0
      %p72 = por %p70, %p71
      %p73 = scmp.ne.s32.totalorder %s59, %s60
      %p74 = scmp.eq.s32.totalorder %s14, 1
      %p75 = por %p73, %p74
      %p77 = scmp.ne.s32.totalorder %s60, %s76
      %p78 = scmp.eq.s32.totalorder %s14, 0
      %p79 = por %p77, %p78
      %s80 = ssub.s32 %s15, %s27
      %s81 = ssub.s32 %s16, %s23
      %s82 = sor.u32 %s80, %s81
      %p83 = scmp.eq.s32.totalorder %s82, 0
      %s85 = sadd.s32 %s84, 1
      %s86 = scalar_select %p83, %s84, %s85
      %p89 = pneg %p83
      %p90 = scmp.eq.s32.totalorder %s8, 1
      %p91 = por %p89, %p90
      %p92 = scmp.ne.s32.totalorder %s84, %s87
      %p93 = scmp.eq.s32.totalorder %s8, 0
      %p94 = por %p92, %p93
      %p95 = scmp.ne.s32.totalorder %s84, %s87
      %p96 = scmp.eq.s32.totalorder %s13, 1
      %p97 = por %p95, %p96
      %p98 = scmp.ne.s32.totalorder %s87, %s88
      %p99 = scmp.eq.s32.totalorder %s13, 0
      %p100 = por %p98, %p99
      %p101 = scmp.ne.s32.totalorder %s87, %s88
      %p102 = scmp.eq.s32.totalorder %s14, 1
      %p103 = por %p101, %p102
      %p105 = scmp.ne.s32.totalorder %s88, %s104
      %p106 = scmp.eq.s32.totalorder %s14, 0
      %p107 = por %p105, %p106
      %p108 = scmp.le.s32.totalorder 1, %s8
      %p109 = scmp.lt.s32.totalorder %s8, 3
      %p110 = pnand %p108, %p109
      %p111 = pneg %p110
      // Predicated region
      $region9: #{fpmc_forward.1} parent=5 // pred_check
        _
      $region10: #{fpmc_forward.1} parent=5 // pred_check_branch
        %113 = sbr.rel (%p110) target = $region12
      $region11: #{fpmc_forward.1} parent=5 // pred_region
        %s114 = ssub.s32 %s8, 1
        // Predicated region
        $region13: #{fpmc_forward.1} parent=11 // pred_check
          %p115 = pneg %p46
        $region14: #{fpmc_forward.1} parent=11 // pred_check_branch
          %117 = sbr.rel (%p115) target = $region16
        $region15: #{fpmc_forward.1} parent=11 // pred_region
          %s118 = smul.u32 2, %s17
          %p119 = scmp.lt.s32.totalorder %s118, 1
          %s120 = scalar_select %p119, %s118, 1
          %s121 = smul.addr %s120, 4
          %s122 = scalar_lea.vmem %s0, %s121
          %s123 = smul.u32 2, %s17
        $region16: #{fpmc_forward.1} parent=11 // pred_fallthru
          _
      $region12: #{fpmc_forward.1} parent=5 // pred_fallthru
        _
      %p124 = scmp.lt.s32.totalorder %s8, 2
      // Predicated region
      $region17: #{fpmc_forward.1} parent=5 // pred_check
        %p125 = pneg %p124
      $region18: #{fpmc_forward.1} parent=5 // pred_check_branch
        %127 = sbr.rel (%p125) target = $region20
      $region19: #{fpmc_forward.1} parent=5 // pred_region
        // Predicated region
        $region21: #{fpmc_forward.1} parent=19 // pred_check
          %p128 = pneg %p66
        $region22: #{fpmc_forward.1} parent=19 // pred_check_branch
          %130 = sbr.rel (%p128) target = $region24
        $region23: #{fpmc_forward.1} parent=19 // pred_region
          %s131 = sand.u32 %s56, 1
          %s132 = sand.u32 %s56, 1
          %s133 = smul.addr %s132, 256
          %s134 = scalar_lea.vmem [#allocation2], %s133
          %s135 = smul.u32 16, %s16
          %s136 = smul.addr %s135, 4
          %s137 = scalar_lea.vmem %s1, %s136
          // Predicated region
          $region25: #{fpmc_forward.1} parent=23 // pred_check
            _
          $region26: #{fpmc_forward.1} parent=23 // pred_check_branch
            %139 = sbr.rel (0) target = $region28
          $region27: #{fpmc_forward.1} parent=23 // pred_region
            // Predicated region
            $region29: #{fpmc_forward.1} parent=27 // pred_check
              _
            $region30: #{fpmc_forward.1} parent=27 // pred_check_branch
              %141 = sbr.rel (0) target = $region32
            $region31: #{fpmc_forward.1} parent=27 // pred_region
              loop: start=0, step=1, limit=1
              $region33: #{fpmc_forward.1} parent=31 // loop_pre_header
                _
              $region34: #{fpmc_forward.1} parent=31 // loop_header
                %s143 = sphi 0, %s147
                %p144 = scmp.ge.s32.totalorder %s143, 1
                %s148 = sphi %s137, %s137
                %s149 = sphi %s134, %s134
              $region35: #{fpmc_forward.1} parent=31 // loop_header_branch
                %146 = sbr.rel (%p144) target = $region39
              $region36: #{fpmc_forward.1} parent=31 // loop_body
                %v150 = vld [vmem:[%s148] sm:$0xff]
                %151 = vst [vmem:[%s149] sm:$0xff] %v150
                %v152 = vld [vmem:[%s148 + $0x8] sm:$0xff]
                %153 = vst [vmem:[%s149 + $0x8] sm:$0xff] %v152
                %v154 = vld [vmem:[%s148 + $0x10] sm:$0xff]
                %155 = vst [vmem:[%s149 + $0x10] sm:$0xff] %v154
                %v156 = vld [vmem:[%s148 + $0x18] sm:$0xff]
                %157 = vst [vmem:[%s149 + $0x18] sm:$0xff] %v156
                %v158 = vld [vmem:[%s148 + $0x20] sm:$0xff]
                %159 = vst [vmem:[%s149 + $0x20] sm:$0xff] %v158
                %v160 = vld [vmem:[%s148 + $0x28] sm:$0xff]
                %161 = vst [vmem:[%s149 + $0x28] sm:$0xff] %v160
                %v162 = vld [vmem:[%s148 + $0x30] sm:$0xff]
                %163 = vst [vmem:[%s149 + $0x30] sm:$0xff] %v162
                %v164 = vld [vmem:[%s148 + $0x38] sm:$0xff]
                %165 = vst [vmem:[%s149 + $0x38] sm:$0xff] %v164
                %v166 = vld [vmem:[%s148 + $0x80] sm:$0xff]
                %167 = vst [vmem:[%s149 + $0x40] sm:$0xff] %v166
                %v168 = vld [vmem:[%s148 + $0x88] sm:$0xff]
                %169 = vst [vmem:[%s149 + $0x48] sm:$0xff] %v168
                %v170 = vld [vmem:[%s148 + $0x90] sm:$0xff]
                %171 = vst [vmem:[%s149 + $0x50] sm:$0xff] %v170
                %v172 = vld [vmem:[%s148 + $0x98] sm:$0xff]
                %173 = vst [vmem:[%s149 + $0x58] sm:$0xff] %v172
                %v174 = vld [vmem:[%s148 + $0xa0] sm:$0xff]
                %175 = vst [vmem:[%s149 + $0x60] sm:$0xff] %v174
                %v176 = vld [vmem:[%s148 + $0xa8] sm:$0xff]
                %177 = vst [vmem:[%s149 + $0x68] sm:$0xff] %v176
                %v178 = vld [vmem:[%s148 + $0xb0] sm:$0xff]
                %179 = vst [vmem:[%s149 + $0x70] sm:$0xff] %v178
                %v180 = vld [vmem:[%s148 + $0xb8] sm:$0xff]
                %181 = vst [vmem:[%s149 + $0x78] sm:$0xff] %v180
                %v182 = vld [vmem:[%s148 + $0x100] sm:$0xff]
                %183 = vst [vmem:[%s149 + $0x80] sm:$0xff] %v182
                %v184 = vld [vmem:[%s148 + $0x108] sm:$0xff]
                %185 = vst [vmem:[%s149 + $0x88] sm:$0xff] %v184
                %v186 = vld [vmem:[%s148 + $0x110] sm:$0xff]
                %187 = vst [vmem:[%s149 + $0x90] sm:$0xff] %v186
                %v188 = vld [vmem:[%s148 + $0x118] sm:$0xff]
                %189 = vst [vmem:[%s149 + $0x98] sm:$0xff] %v188
                %v190 = vld [vmem:[%s148 + $0x120] sm:$0xff]
                %191 = vst [vmem:[%s149 + $0xa0] sm:$0xff] %v190
                %v192 = vld [vmem:[%s148 + $0x128] sm:$0xff]
                %193 = vst [vmem:[%s149 + $0xa8] sm:$0xff] %v192
                %v194 = vld [vmem:[%s148 + $0x130] sm:$0xff]
                %195 = vst [vmem:[%s149 + $0xb0] sm:$0xff] %v194
                %v196 = vld [vmem:[%s148 + $0x138] sm:$0xff]
                %197 = vst [vmem:[%s149 + $0xb8] sm:$0xff] %v196
                %v198 = vld [vmem:[%s148 + $0x180] sm:$0xff]
                %199 = vst [vmem:[%s149 + $0xc0] sm:$0xff] %v198
                %v200 = vld [vmem:[%s148 + $0x188] sm:$0xff]
                %201 = vst [vmem:[%s149 + $0xc8] sm:$0xff] %v200
                %v202 = vld [vmem:[%s148 + $0x190] sm:$0xff]
                %203 = vst [vmem:[%s149 + $0xd0] sm:$0xff] %v202
                %v204 = vld [vmem:[%s148 + $0x198] sm:$0xff]
                %205 = vst [vmem:[%s149 + $0xd8] sm:$0xff] %v204
                %v206 = vld [vmem:[%s148 + $0x1a0] sm:$0xff]
                %207 = vst [vmem:[%s149 + $0xe0] sm:$0xff] %v206
                %v208 = vld [vmem:[%s148 + $0x1a8] sm:$0xff]
                %209 = vst [vmem:[%s149 + $0xe8] sm:$0xff] %v208
                %v210 = vld [vmem:[%s148 + $0x1b0] sm:$0xff]
                %211 = vst [vmem:[%s149 + $0xf0] sm:$0xff] %v210
                %v212 = vld [vmem:[%s148 + $0x1b8] sm:$0xff]
                %213 = vst [vmem:[%s149 + $0xf8] sm:$0xff] %v212
              $region37: #{fpmc_forward.1} parent=31 // loop_footer
                %s147 = sadd.s32 1, %s143
              $region38: #{fpmc_forward.1} parent=31 // loop_footer_branch
                %142 = sbr.rel target = $region34
              $region39: #{fpmc_forward.1} parent=31 // loop_exit
                _
            $region32: #{fpmc_forward.1} parent=27 // pred_fallthru
              _
            // Predicated region
            $region40: #{fpmc_forward.1} parent=27 // pred_check
              _
            $region41: #{fpmc_forward.1} parent=27 // pred_check_branch
              %215 = sbr.rel target = $region43
            $region42: #{fpmc_forward.1} parent=27 // pred_region
              _
            $region43: #{fpmc_forward.1} parent=27 // pred_fallthru
              _
          $region28: #{fpmc_forward.1} parent=23 // pred_fallthru
            _
          %216 = vnop
        $region24: #{fpmc_forward.1} parent=19 // pred_fallthru
          _
      $region20: #{fpmc_forward.1} parent=5 // pred_fallthru
        _
      %p217 = scmp.le.s32.totalorder 1, %s8
      %p218 = scmp.lt.s32.totalorder %s8, 3
      %p219 = pnand %p217, %p218
      %p220 = pneg %p219
      // Predicated region
      $region44: #{fpmc_forward.1} parent=5 // pred_check
        _
      $region45: #{fpmc_forward.1} parent=5 // pred_check_branch
        %222 = sbr.rel (%p219) target = $region47
      $region46: #{fpmc_forward.1} parent=5 // pred_region
        %s223 = ssub.s32 %s8, 1
        %s224 = sand.u32 %s59, 1
        %s225 = sand.u32 %s59, 1
        %s226 = smul.addr %s225, 256
        %s227 = scalar_lea.vmem [#allocation2], %s226
        // Predicated region
        $region48: #{fpmc_forward.1} parent=46 // pred_check
          %p228 = pneg %p72
        $region49: #{fpmc_forward.1} parent=46 // pred_check_branch
          %230 = sbr.rel (%p228) target = $region51
        $region50: #{fpmc_forward.1} parent=46 // pred_region
          _
        $region51: #{fpmc_forward.1} parent=46 // pred_fallthru
          _
        %s231 = smul.u32 2, %s17
        %p232 = scmp.lt.s32.totalorder %s231, 1
        %s233 = scalar_select %p232, %s231, 1
        %s234 = smul.addr %s233, 4
        %s235 = scalar_lea.vmem %s0, %s234
        %p236 = pneg %p46
        %p237 = pneg %p43
        %s238 = sand.u32 %s59, 1
        %s239 = sand.u32 %s59, 1
        %s240 = smul.addr %s239, 256
        %s241 = scalar_lea.vmem [#allocation2], %s240
        %p242 = pneg %p72
        %p243 = pneg %p69
        %p244 = pneg %p100
        %p245 = pneg %p97
        %s246 = sand.u32 %s87, 1
        %s247 = sand.u32 %s87, 1
        %s248 = smul.addr %s247, 128
        %s249 = scalar_lea.vmem [#allocation3], %s248
        %s250 = smul.u32 2, %s17
        %p251 = scmp.lt.s32.totalorder %s250, 1
        %s252 = scalar_select %p251, %s250, 1
        %s253 = smul.addr %s252, 4
        %s254 = scalar_lea.vmem %s0, %s253
        %s255 = smul.u32 2, %s17
        %s256 = smul.u32 16, %s18
        %s257 = smul.u32 2, %s17
        %s258 = smul.u32 16, %s18
        %v260 = vld [vmem:[%s254] sm:$0xf]
        %v261 = vld [vmem:[%s254 + $0x4] sm:$0xf]
        %v262 = vld [vmem:[%s227] sm:$0xff]
        %v263 = vld [vmem:[%s227 + $0x8] sm:$0xff]
        %v264 = vld [vmem:[%s227 + $0x10] sm:$0xff]
        %v265 = vld [vmem:[%s227 + $0x18] sm:$0xff]
        %v266 = vld [vmem:[%s227 + $0x20] sm:$0xff]
        %v267 = vld [vmem:[%s227 + $0x28] sm:$0xff]
        %v268 = vld [vmem:[%s227 + $0x30] sm:$0xff]
        %v269 = vld [vmem:[%s227 + $0x38] sm:$0xff]
        %v270 = vld [vmem:[%s227 + $0x40] sm:$0xff]
        %v271 = vld [vmem:[%s227 + $0x48] sm:$0xff]
        %v272 = vld [vmem:[%s227 + $0x50] sm:$0xff]
        %v273 = vld [vmem:[%s227 + $0x58] sm:$0xff]
        %v274 = vld [vmem:[%s227 + $0x60] sm:$0xff]
        %v275 = vld [vmem:[%s227 + $0x68] sm:$0xff]
        %v276 = vld [vmem:[%s227 + $0x70] sm:$0xff]
        %v277 = vld [vmem:[%s227 + $0x78] sm:$0xff]
        %v278 = vld [vmem:[%s227 + $0x80] sm:$0xff]
        %v279 = vld [vmem:[%s227 + $0x88] sm:$0xff]
        %v280 = vld [vmem:[%s227 + $0x90] sm:$0xff]
        %v281 = vld [vmem:[%s227 + $0x98] sm:$0xff]
        %v282 = vld [vmem:[%s227 + $0xa0] sm:$0xff]
        %v283 = vld [vmem:[%s227 + $0xa8] sm:$0xff]
        %v284 = vld [vmem:[%s227 + $0xb0] sm:$0xff]
        %v285 = vld [vmem:[%s227 + $0xb8] sm:$0xff]
        %v286 = vld [vmem:[%s227 + $0xc0] sm:$0xff]
        %v287 = vld [vmem:[%s227 + $0xc8] sm:$0xff]
        %v288 = vld [vmem:[%s227 + $0xd0] sm:$0xff]
        %v289 = vld [vmem:[%s227 + $0xd8] sm:$0xff]
        %v290 = vld [vmem:[%s227 + $0xe0] sm:$0xff]
        %v291 = vld [vmem:[%s227 + $0xe8] sm:$0xff]
        %v292 = vld [vmem:[%s227 + $0xf0] sm:$0xff]
        %v293 = vld [vmem:[%s227 + $0xf8] sm:$0xff]
        %v296 = vunpack.c.l.b16 %v260
        %v297 = vunpack.c.l.b16 %v261
        %v298 = vpack.c.b16 %v297, %v296
        %v331 = vunpack.c.l.b16 %v262
        %v332 = vunpack.c.h.b16 %v262
        %v333 = vunpack.c.l.b16 %v263
        %v334 = vunpack.c.h.b16 %v263
        %v335 = vunpack.c.l.b16 %v264
        %v336 = vunpack.c.h.b16 %v264
        %v337 = vunpack.c.l.b16 %v265
        %v338 = vunpack.c.h.b16 %v265
        %v339 = vunpack.c.l.b16 %v266
        %v340 = vunpack.c.h.b16 %v266
        %v341 = vunpack.c.l.b16 %v267
        %v342 = vunpack.c.h.b16 %v267
        %v343 = vunpack.c.l.b16 %v268
        %v344 = vunpack.c.h.b16 %v268
        %v345 = vunpack.c.l.b16 %v269
        %v346 = vunpack.c.h.b16 %v269
        %v347 = vunpack.c.l.b16 %v270
        %v348 = vunpack.c.h.b16 %v270
        %v349 = vunpack.c.l.b16 %v271
        %v350 = vunpack.c.h.b16 %v271
        %v351 = vunpack.c.l.b16 %v272
        %v352 = vunpack.c.h.b16 %v272
        %v353 = vunpack.c.l.b16 %v273
        %v354 = vunpack.c.h.b16 %v273
        %v355 = vunpack.c.l.b16 %v274
        %v356 = vunpack.c.h.b16 %v274
        %v357 = vunpack.c.l.b16 %v275
        %v358 = vunpack.c.h.b16 %v275
        %v359 = vunpack.c.l.b16 %v276
        %v360 = vunpack.c.h.b16 %v276
        %v361 = vunpack.c.l.b16 %v277
        %v362 = vunpack.c.h.b16 %v277
        %v363 = vunpack.c.l.b16 %v278
        %v364 = vunpack.c.h.b16 %v278
        %v365 = vunpack.c.l.b16 %v279
        %v366 = vunpack.c.h.b16 %v279
        %v367 = vunpack.c.l.b16 %v280
        %v368 = vunpack.c.h.b16 %v280
        %v369 = vunpack.c.l.b16 %v281
        %v370 = vunpack.c.h.b16 %v281
        %v371 = vunpack.c.l.b16 %v282
        %v372 = vunpack.c.h.b16 %v282
        %v373 = vunpack.c.l.b16 %v283
        %v374 = vunpack.c.h.b16 %v283
        %v375 = vunpack.c.l.b16 %v284
        %v376 = vunpack.c.h.b16 %v284
        %v377 = vunpack.c.l.b16 %v285
        %v378 = vunpack.c.h.b16 %v285
        %v379 = vunpack.c.l.b16 %v286
        %v380 = vunpack.c.h.b16 %v286
        %v381 = vunpack.c.l.b16 %v287
        %v382 = vunpack.c.h.b16 %v287
        %v383 = vunpack.c.l.b16 %v288
        %v384 = vunpack.c.h.b16 %v288
        %v385 = vunpack.c.l.b16 %v289
        %v386 = vunpack.c.h.b16 %v289
        %v387 = vunpack.c.l.b16 %v290
        %v388 = vunpack.c.h.b16 %v290
        %v389 = vunpack.c.l.b16 %v291
        %v390 = vunpack.c.h.b16 %v291
        %v391 = vunpack.c.l.b16 %v292
        %v392 = vunpack.c.h.b16 %v292
        %v393 = vunpack.c.l.b16 %v293
        %v394 = vunpack.c.h.b16 %v293
        %v395 = vpack.c.b16 %v347, %v331
        %v396 = vpack.c.b16 %v348, %v332
        %v397 = vpack.c.b16 %v349, %v333
        %v398 = vpack.c.b16 %v350, %v334
        %v399 = vpack.c.b16 %v351, %v335
        %v400 = vpack.c.b16 %v352, %v336
        %v401 = vpack.c.b16 %v353, %v337
        %v402 = vpack.c.b16 %v354, %v338
        %v403 = vpack.c.b16 %v355, %v339
        %v404 = vpack.c.b16 %v356, %v340
        %v405 = vpack.c.b16 %v357, %v341
        %v406 = vpack.c.b16 %v358, %v342
        %v407 = vpack.c.b16 %v359, %v343
        %v408 = vpack.c.b16 %v360, %v344
        %v409 = vpack.c.b16 %v361, %v345
        %v410 = vpack.c.b16 %v362, %v346
        %v411 = vpack.c.b16 %v379, %v363
        %v412 = vpack.c.b16 %v380, %v364
        %v413 = vpack.c.b16 %v381, %v365
        %v414 = vpack.c.b16 %v382, %v366
        %v415 = vpack.c.b16 %v383, %v367
        %v416 = vpack.c.b16 %v384, %v368
        %v417 = vpack.c.b16 %v385, %v369
        %v418 = vpack.c.b16 %v386, %v370
        %v419 = vpack.c.b16 %v387, %v371
        %v420 = vpack.c.b16 %v388, %v372
        %v421 = vpack.c.b16 %v389, %v373
        %v422 = vpack.c.b16 %v390, %v374
        %v423 = vpack.c.b16 %v391, %v375
        %v424 = vpack.c.b16 %v392, %v376
        %v425 = vpack.c.b16 %v393, %v377
        %v426 = vpack.c.b16 %v394, %v378
        %vm459 = vcmask 261120
        %v461 = vsel %vm459, %v298, 0
        %463 = vmatprep.subr.bf16.mxu0 %v396
        %464 = vmatpush1.bf16.msra.mxu0 %v395
        %465 = vmatprep.subr.bf16.mxu0 %v412
        %466 = vmatpush1.bf16.msra.mxu0 %v411
        %467 = vmatprep.subr.bf16.mxu0 0
        %468 = vmatpush1.bf16.msra.mxu0 0
        %469 = vmatprep.subr.bf16.mxu0 0
        %470 = vmatpush1.bf16.msra.mxu0 0
        %471 = vmatprep.subr.bf16.mxu0 0
        %472 = vmatpush1.bf16.msra.mxu0 0
        %473 = vmatprep.subr.bf16.mxu0 0
        %474 = vmatpush1.bf16.msra.mxu0 0
        %475 = vmatprep.subr.bf16.mxu0 0
        %476 = vmatpush1.bf16.msra.mxu0 0
        %477 = vmatprep.subr.bf16.mxu0 0
        %478 = vmatpush1.bf16.msra.mxu0 0
        %479 = vmatprep.subr.bf16.mxu0 0
        %480 = vmatpush1.bf16.msra.mxu0 0
        %481 = vmatprep.subr.bf16.mxu0 0
        %482 = vmatpush1.bf16.msra.mxu0 0
        %483 = vmatprep.subr.bf16.mxu0 0
        %484 = vmatpush1.bf16.msra.mxu0 0
        %485 = vmatprep.subr.bf16.mxu0 0
        %486 = vmatpush1.bf16.msra.mxu0 0
        %487 = vmatprep.subr.bf16.mxu0 0
        %488 = vmatpush1.bf16.msra.mxu0 0
        %489 = vmatprep.subr.bf16.mxu0 0
        %490 = vmatpush1.bf16.msra.mxu0 0
        %491 = vmatprep.subr.bf16.mxu0 0
        %492 = vmatpush1.bf16.msra.mxu0 0
        %493 = vmatprep.subr.bf16.mxu0 0
        %494 = vmatpush1.bf16.msra.mxu0 0
        %495 = vmatprep.mubr.bf16.mxu0 0
        %496 = vmatmul.mubr.bf16.gmra.mrb[0].mxu0 %v461
        %v497 = vpop.f32.mrb[0].mxu0
        %v498 = vadd.f32 0.0, %v497
        %v499 = vpop.f32.mrb[0].mxu0
        %v500 = vadd.f32 0.0, %v499
        %v501 = vpop.f32.mrb[0].mxu0
        %v502 = vadd.f32 0.0, %v501
        %v503 = vpop.f32.mrb[0].mxu0
        %v504 = vadd.f32 0.0, %v503
        %505 = vdwg.mxu0
        %506 = vmatprep.subr.bf16.mxu0 %v398
        %507 = vmatpush1.bf16.msra.mxu0 %v397
        %508 = vmatprep.subr.bf16.mxu0 %v414
        %509 = vmatpush1.bf16.msra.mxu0 %v413
        %510 = vmatprep.subr.bf16.mxu0 0
        %511 = vmatpush1.bf16.msra.mxu0 0
        %512 = vmatprep.subr.bf16.mxu0 0
        %513 = vmatpush1.bf16.msra.mxu0 0
        %514 = vmatprep.subr.bf16.mxu0 0
        %515 = vmatpush1.bf16.msra.mxu0 0
        %516 = vmatprep.subr.bf16.mxu0 0
        %517 = vmatpush1.bf16.msra.mxu0 0
        %518 = vmatprep.subr.bf16.mxu0 0
        %519 = vmatpush1.bf16.msra.mxu0 0
        %520 = vmatprep.subr.bf16.mxu0 0
        %521 = vmatpush1.bf16.msra.mxu0 0
        %522 = vmatprep.subr.bf16.mxu0 0
        %523 = vmatpush1.bf16.msra.mxu0 0
        %524 = vmatprep.subr.bf16.mxu0 0
        %525 = vmatpush1.bf16.msra.mxu0 0
        %526 = vmatprep.subr.bf16.mxu0 0
        %527 = vmatpush1.bf16.msra.mxu0 0
        %528 = vmatprep.subr.bf16.mxu0 0
        %529 = vmatpush1.bf16.msra.mxu0 0
        %530 = vmatprep.subr.bf16.mxu0 0
        %531 = vmatpush1.bf16.msra.mxu0 0
        %532 = vmatprep.subr.bf16.mxu0 0
        %533 = vmatpush1.bf16.msra.mxu0 0
        %534 = vmatprep.subr.bf16.mxu0 0
        %535 = vmatpush1.bf16.msra.mxu0 0
        %536 = vmatprep.subr.bf16.mxu0 0
        %537 = vmatpush1.bf16.msra.mxu0 0
        %538 = vmatprep.mubr.bf16.mxu0 0
        %539 = vmatmul.mubr.bf16.gmra.mrb[0].mxu0 %v461
        %v540 = vpop.f32.mrb[0].mxu0
        %v541 = vadd.f32 0.0, %v540
        %v542 = vpop.f32.mrb[0].mxu0
        %v543 = vadd.f32 0.0, %v542
        %v544 = vpop.f32.mrb[0].mxu0
        %v545 = vadd.f32 0.0, %v544
        %v546 = vpop.f32.mrb[0].mxu0
        %v547 = vadd.f32 0.0, %v546
        %548 = vdwg.mxu0
        %549 = vmatprep.subr.bf16.mxu0 %v400
        %550 = vmatpush1.bf16.msra.mxu0 %v399
        %551 = vmatprep.subr.bf16.mxu0 %v416
        %552 = vmatpush1.bf16.msra.mxu0 %v415
        %553 = vmatprep.subr.bf16.mxu0 0
        %554 = vmatpush1.bf16.msra.mxu0 0
        %555 = vmatprep.subr.bf16.mxu0 0
        %556 = vmatpush1.bf16.msra.mxu0 0
        %557 = vmatprep.subr.bf16.mxu0 0
        %558 = vmatpush1.bf16.msra.mxu0 0
        %559 = vmatprep.subr.bf16.mxu0 0
        %560 = vmatpush1.bf16.msra.mxu0 0
        %561 = vmatprep.subr.bf16.mxu0 0
        %562 = vmatpush1.bf16.msra.mxu0 0
        %563 = vmatprep.subr.bf16.mxu0 0
        %564 = vmatpush1.bf16.msra.mxu0 0
        %565 = vmatprep.subr.bf16.mxu0 0
        %566 = vmatpush1.bf16.msra.mxu0 0
        %567 = vmatprep.subr.bf16.mxu0 0
        %568 = vmatpush1.bf16.msra.mxu0 0
        %569 = vmatprep.subr.bf16.mxu0 0
        %570 = vmatpush1.bf16.msra.mxu0 0
        %571 = vmatprep.subr.bf16.mxu0 0
        %572 = vmatpush1.bf16.msra.mxu0 0
        %573 = vmatprep.subr.bf16.mxu0 0
        %574 = vmatpush1.bf16.msra.mxu0 0
        %575 = vmatprep.subr.bf16.mxu0 0
        %576 = vmatpush1.bf16.msra.mxu0 0
        %577 = vmatprep.subr.bf16.mxu0 0
        %578 = vmatpush1.bf16.msra.mxu0 0
        %579 = vmatprep.subr.bf16.mxu0 0
        %580 = vmatpush1.bf16.msra.mxu0 0
        %581 = vmatprep.mubr.bf16.mxu0 0
        %582 = vmatmul.mubr.bf16.gmra.mrb[0].mxu0 %v461
        %v583 = vpop.f32.mrb[0].mxu0
        %v584 = vadd.f32 0.0, %v583
        %v585 = vpop.f32.mrb[0].mxu0
        %v586 = vadd.f32 0.0, %v585
        %v587 = vpop.f32.mrb[0].mxu0
        %v588 = vadd.f32 0.0, %v587
        %v589 = vpop.f32.mrb[0].mxu0
        %v590 = vadd.f32 0.0, %v589
        %591 = vdwg.mxu0
        %592 = vmatprep.subr.bf16.mxu0 %v402
        %593 = vmatpush1.bf16.msra.mxu0 %v401
        %594 = vmatprep.subr.bf16.mxu0 %v418
        %595 = vmatpush1.bf16.msra.mxu0 %v417
        %596 = vmatprep.subr.bf16.mxu0 0
        %597 = vmatpush1.bf16.msra.mxu0 0
        %598 = vmatprep.subr.bf16.mxu0 0
        %599 = vmatpush1.bf16.msra.mxu0 0
        %600 = vmatprep.subr.bf16.mxu0 0
        %601 = vmatpush1.bf16.msra.mxu0 0
        %602 = vmatprep.subr.bf16.mxu0 0
        %603 = vmatpush1.bf16.msra.mxu0 0
        %604 = vmatprep.subr.bf16.mxu0 0
        %605 = vmatpush1.bf16.msra.mxu0 0
        %606 = vmatprep.subr.bf16.mxu0 0
        %607 = vmatpush1.bf16.msra.mxu0 0
        %608 = vmatprep.subr.bf16.mxu0 0
        %609 = vmatpush1.bf16.msra.mxu0 0
        %610 = vmatprep.subr.bf16.mxu0 0
        %611 = vmatpush1.bf16.msra.mxu0 0
        %612 = vmatprep.subr.bf16.mxu0 0
        %613 = vmatpush1.bf16.msra.mxu0 0
        %614 = vmatprep.subr.bf16.mxu0 0
        %615 = vmatpush1.bf16.msra.mxu0 0
        %616 = vmatprep.subr.bf16.mxu0 0
        %617 = vmatpush1.bf16.msra.mxu0 0
        %618 = vmatprep.subr.bf16.mxu0 0
        %619 = vmatpush1.bf16.msra.mxu0 0
        %620 = vmatprep.subr.bf16.mxu0 0
        %621 = vmatpush1.bf16.msra.mxu0 0
        %622 = vmatprep.subr.bf16.mxu0 0
        %623 = vmatpush1.bf16.msra.mxu0 0
        %624 = vmatprep.mubr.bf16.mxu0 0
        %625 = vmatmul.mubr.bf16.gmra.mrb[0].mxu0 %v461
        %v626 = vpop.f32.mrb[0].mxu0
        %v627 = vadd.f32 0.0, %v626
        %v628 = vpop.f32.mrb[0].mxu0
        %v629 = vadd.f32 0.0, %v628
        %v630 = vpop.f32.mrb[0].mxu0
        %v631 = vadd.f32 0.0, %v630
        %v632 = vpop.f32.mrb[0].mxu0
        %v633 = vadd.f32 0.0, %v632
        %634 = vdwg.mxu0
        %635 = vmatprep.subr.bf16.mxu0 %v404
        %636 = vmatpush1.bf16.msra.mxu0 %v403
        %637 = vmatprep.subr.bf16.mxu0 %v420
        %638 = vmatpush1.bf16.msra.mxu0 %v419
        %639 = vmatprep.subr.bf16.mxu0 0
        %640 = vmatpush1.bf16.msra.mxu0 0
        %641 = vmatprep.subr.bf16.mxu0 0
        %642 = vmatpush1.bf16.msra.mxu0 0
        %643 = vmatprep.subr.bf16.mxu0 0
        %644 = vmatpush1.bf16.msra.mxu0 0
        %645 = vmatprep.subr.bf16.mxu0 0
        %646 = vmatpush1.bf16.msra.mxu0 0
        %647 = vmatprep.subr.bf16.mxu0 0
        %648 = vmatpush1.bf16.msra.mxu0 0
        %649 = vmatprep.subr.bf16.mxu0 0
        %650 = vmatpush1.bf16.msra.mxu0 0
        %651 = vmatprep.subr.bf16.mxu0 0
        %652 = vmatpush1.bf16.msra.mxu0 0
        %653 = vmatprep.subr.bf16.mxu0 0
        %654 = vmatpush1.bf16.msra.mxu0 0
        %655 = vmatprep.subr.bf16.mxu0 0
        %656 = vmatpush1.bf16.msra.mxu0 0
        %657 = vmatprep.subr.bf16.mxu0 0
        %658 = vmatpush1.bf16.msra.mxu0 0
        %659 = vmatprep.subr.bf16.mxu0 0
        %660 = vmatpush1.bf16.msra.mxu0 0
        %661 = vmatprep.subr.bf16.mxu0 0
        %662 = vmatpush1.bf16.msra.mxu0 0
        %663 = vmatprep.subr.bf16.mxu0 0
        %664 = vmatpush1.bf16.msra.mxu0 0
        %665 = vmatprep.subr.bf16.mxu0 0
        %666 = vmatpush1.bf16.msra.mxu0 0
        %667 = vmatprep.mubr.bf16.mxu0 0
        %668 = vmatmul.mubr.bf16.gmra.mrb[0].mxu0 %v461
        %v669 = vpop.f32.mrb[0].mxu0
        %v670 = vadd.f32 0.0, %v669
        %v671 = vpop.f32.mrb[0].mxu0
        %v672 = vadd.f32 0.0, %v671
        %v673 = vpop.f32.mrb[0].mxu0
        %v674 = vadd.f32 0.0, %v673
        %v675 = vpop.f32.mrb[0].mxu0
        %v676 = vadd.f32 0.0, %v675
        %677 = vdwg.mxu0
        %678 = vmatprep.subr.bf16.mxu0 %v406
        %679 = vmatpush1.bf16.msra.mxu0 %v405
        %680 = vmatprep.subr.bf16.mxu0 %v422
        %681 = vmatpush1.bf16.msra.mxu0 %v421
        %682 = vmatprep.subr.bf16.mxu0 0
        %683 = vmatpush1.bf16.msra.mxu0 0
        %684 = vmatprep.subr.bf16.mxu0 0
        %685 = vmatpush1.bf16.msra.mxu0 0
        %686 = vmatprep.subr.bf16.mxu0 0
        %687 = vmatpush1.bf16.msra.mxu0 0
        %688 = vmatprep.subr.bf16.mxu0 0
        %689 = vmatpush1.bf16.msra.mxu0 0
        %690 = vmatprep.subr.bf16.mxu0 0
        %691 = vmatpush1.bf16.msra.mxu0 0
        %692 = vmatprep.subr.bf16.mxu0 0
        %693 = vmatpush1.bf16.msra.mxu0 0
        %694 = vmatprep.subr.bf16.mxu0 0
        %695 = vmatpush1.bf16.msra.mxu0 0
        %696 = vmatprep.subr.bf16.mxu0 0
        %697 = vmatpush1.bf16.msra.mxu0 0
        %698 = vmatprep.subr.bf16.mxu0 0
        %699 = vmatpush1.bf16.msra.mxu0 0
        %700 = vmatprep.subr.bf16.mxu0 0
        %701 = vmatpush1.bf16.msra.mxu0 0
        %702 = vmatprep.subr.bf16.mxu0 0
        %703 = vmatpush1.bf16.msra.mxu0 0
        %704 = vmatprep.subr.bf16.mxu0 0
        %705 = vmatpush1.bf16.msra.mxu0 0
        %706 = vmatprep.subr.bf16.mxu0 0
        %707 = vmatpush1.bf16.msra.mxu0 0
        %708 = vmatprep.subr.bf16.mxu0 0
        %709 = vmatpush1.bf16.msra.mxu0 0
        %710 = vmatprep.mubr.bf16.mxu0 0
        %711 = vmatmul.mubr.bf16.gmra.mrb[0].mxu0 %v461
        %v712 = vpop.f32.mrb[0].mxu0
        %v713 = vadd.f32 0.0, %v712
        %v714 = vpop.f32.mrb[0].mxu0
        %v715 = vadd.f32 0.0, %v714
        %v716 = vpop.f32.mrb[0].mxu0
        %v717 = vadd.f32 0.0, %v716
        %v718 = vpop.f32.mrb[0].mxu0
        %v719 = vadd.f32 0.0, %v718
        %720 = vdwg.mxu0
        %721 = vmatprep.subr.bf16.mxu0 %v408
        %722 = vmatpush1.bf16.msra.mxu0 %v407
        %723 = vmatprep.subr.bf16.mxu0 %v424
        %724 = vmatpush1.bf16.msra.mxu0 %v423
        %725 = vmatprep.subr.bf16.mxu0 0
        %726 = vmatpush1.bf16.msra.mxu0 0
        %727 = vmatprep.subr.bf16.mxu0 0
        %728 = vmatpush1.bf16.msra.mxu0 0
        %729 = vmatprep.subr.bf16.mxu0 0
        %730 = vmatpush1.bf16.msra.mxu0 0
        %731 = vmatprep.subr.bf16.mxu0 0
        %732 = vmatpush1.bf16.msra.mxu0 0
        %733 = vmatprep.subr.bf16.mxu0 0
        %734 = vmatpush1.bf16.msra.mxu0 0
        %735 = vmatprep.subr.bf16.mxu0 0
        %736 = vmatpush1.bf16.msra.mxu0 0
        %737 = vmatprep.subr.bf16.mxu0 0
        %738 = vmatpush1.bf16.msra.mxu0 0
        %739 = vmatprep.subr.bf16.mxu0 0
        %740 = vmatpush1.bf16.msra.mxu0 0
        %741 = vmatprep.subr.bf16.mxu0 0
        %742 = vmatpush1.bf16.msra.mxu0 0
        %743 = vmatprep.subr.bf16.mxu0 0
        %744 = vmatpush1.bf16.msra.mxu0 0
        %745 = vmatprep.subr.bf16.mxu0 0
        %746 = vmatpush1.bf16.msra.mxu0 0
        %747 = vmatprep.subr.bf16.mxu0 0
        %748 = vmatpush1.bf16.msra.mxu0 0
        %749 = vmatprep.subr.bf16.mxu0 0
        %750 = vmatpush1.bf16.msra.mxu0 0
        %751 = vmatprep.subr.bf16.mxu0 0
        %752 = vmatpush1.bf16.msra.mxu0 0
        %753 = vmatprep.mubr.bf16.mxu0 0
        %754 = vmatmul.mubr.bf16.gmra.mrb[0].mxu0 %v461
        %v755 = vpop.f32.mrb[0].mxu0
        %v756 = vadd.f32 0.0, %v755
        %v757 = vpop.f32.mrb[0].mxu0
        %v758 = vadd.f32 0.0, %v757
        %v759 = vpop.f32.mrb[0].mxu0
        %v760 = vadd.f32 0.0, %v759
        %v761 = vpop.f32.mrb[0].mxu0
        %v762 = vadd.f32 0.0, %v761
        %763 = vdwg.mxu0
        %764 = vmatprep.subr.bf16.mxu0 %v410
        %765 = vmatpush1.bf16.msra.mxu0 %v409
        %766 = vmatprep.subr.bf16.mxu0 %v426
        %767 = vmatpush1.bf16.msra.mxu0 %v425
        %768 = vmatprep.subr.bf16.mxu0 0
        %769 = vmatpush1.bf16.msra.mxu0 0
        %770 = vmatprep.subr.bf16.mxu0 0
        %771 = vmatpush1.bf16.msra.mxu0 0
        %772 = vmatprep.subr.bf16.mxu0 0
        %773 = vmatpush1.bf16.msra.mxu0 0
        %774 = vmatprep.subr.bf16.mxu0 0
        %775 = vmatpush1.bf16.msra.mxu0 0
        %776 = vmatprep.subr.bf16.mxu0 0
        %777 = vmatpush1.bf16.msra.mxu0 0
        %778 = vmatprep.subr.bf16.mxu0 0
        %779 = vmatpush1.bf16.msra.mxu0 0
        %780 = vmatprep.subr.bf16.mxu0 0
        %781 = vmatpush1.bf16.msra.mxu0 0
        %782 = vmatprep.subr.bf16.mxu0 0
        %783 = vmatpush1.bf16.msra.mxu0 0
        %784 = vmatprep.subr.bf16.mxu0 0
        %785 = vmatpush1.bf16.msra.mxu0 0
        %786 = vmatprep.subr.bf16.mxu0 0
        %787 = vmatpush1.bf16.msra.mxu0 0
        %788 = vmatprep.subr.bf16.mxu0 0
        %789 = vmatpush1.bf16.msra.mxu0 0
        %790 = vmatprep.subr.bf16.mxu0 0
        %791 = vmatpush1.bf16.msra.mxu0 0
        %792 = vmatprep.subr.bf16.mxu0 0
        %793 = vmatpush1.bf16.msra.mxu0 0
        %794 = vmatprep.subr.bf16.mxu0 0
        %795 = vmatpush1.bf16.msra.mxu0 0
        %796 = vmatprep.mubr.bf16.mxu0 0
        %797 = vmatmul.mubr.bf16.gmra.mrb[0].mxu0 %v461
        %v798 = vpop.f32.mrb[0].mxu0
        %v799 = vadd.f32 0.0, %v798
        %v800 = vpop.f32.mrb[0].mxu0
        %v801 = vadd.f32 0.0, %v800
        %v802 = vpop.f32.mrb[0].mxu0
        %v803 = vadd.f32 0.0, %v802
        %v804 = vpop.f32.mrb[0].mxu0
        %v805 = vadd.f32 0.0, %v804
        %806 = vdwg.mxu0
        %v807 = vpack.c.bf16 %v502, %v498
        %v808 = vpack.c.bf16 %v504, %v500
        %v809 = vpack.c.bf16 %v545, %v541
        %v810 = vpack.c.bf16 %v547, %v543
        %v811 = vpack.c.bf16 %v588, %v584
        %v812 = vpack.c.bf16 %v590, %v586
        %v813 = vpack.c.bf16 %v631, %v627
        %v814 = vpack.c.bf16 %v633, %v629
        %v815 = vpack.c.bf16 %v674, %v670
        %v816 = vpack.c.bf16 %v676, %v672
        %v817 = vpack.c.bf16 %v717, %v713
        %v818 = vpack.c.bf16 %v719, %v715
        %v819 = vpack.c.bf16 %v760, %v756
        %v820 = vpack.c.bf16 %v762, %v758
        %v821 = vpack.c.bf16 %v803, %v799
        %v822 = vpack.c.bf16 %v805, %v801
        %v839 = vunpack.c.l.b16 %v807
        %v840 = vunpack.c.l.b16 %v808
        %v841 = vunpack.c.l.b16 %v809
        %v842 = vunpack.c.l.b16 %v810
        %v843 = vunpack.c.l.b16 %v811
        %v844 = vunpack.c.l.b16 %v812
        %v845 = vunpack.c.l.b16 %v813
        %v846 = vunpack.c.l.b16 %v814
        %v847 = vunpack.c.l.b16 %v815
        %v848 = vunpack.c.l.b16 %v816
        %v849 = vunpack.c.l.b16 %v817
        %v850 = vunpack.c.l.b16 %v818
        %v851 = vunpack.c.l.b16 %v819
        %v852 = vunpack.c.l.b16 %v820
        %v853 = vunpack.c.l.b16 %v821
        %v854 = vunpack.c.l.b16 %v822
        %v855 = vunpack.c.h.b16 %v807
        %v856 = vunpack.c.h.b16 %v808
        %v857 = vunpack.c.h.b16 %v809
        %v858 = vunpack.c.h.b16 %v810
        %v859 = vunpack.c.h.b16 %v811
        %v860 = vunpack.c.h.b16 %v812
        %v861 = vunpack.c.h.b16 %v813
        %v862 = vunpack.c.h.b16 %v814
        %v863 = vunpack.c.h.b16 %v815
        %v864 = vunpack.c.h.b16 %v816
        %v865 = vunpack.c.h.b16 %v817
        %v866 = vunpack.c.h.b16 %v818
        %v867 = vunpack.c.h.b16 %v819
        %v868 = vunpack.c.h.b16 %v820
        %v869 = vunpack.c.h.b16 %v821
        %v870 = vunpack.c.h.b16 %v822
        %v871 = vpack.c.b16 %v840, %v839
        %v872 = vpack.c.b16 %v842, %v841
        %v873 = vpack.c.b16 %v844, %v843
        %v874 = vpack.c.b16 %v846, %v845
        %v875 = vpack.c.b16 %v848, %v847
        %v876 = vpack.c.b16 %v850, %v849
        %v877 = vpack.c.b16 %v852, %v851
        %v878 = vpack.c.b16 %v854, %v853
        %v879 = vpack.c.b16 %v856, %v855
        %v880 = vpack.c.b16 %v858, %v857
        %v881 = vpack.c.b16 %v860, %v859
        %v882 = vpack.c.b16 %v862, %v861
        %v883 = vpack.c.b16 %v864, %v863
        %v884 = vpack.c.b16 %v866, %v865
        %v885 = vpack.c.b16 %v868, %v867
        %v886 = vpack.c.b16 %v870, %v869
        %903 = vst [vmem:[%s249] sm:$0xff] %v871
        %904 = vst [vmem:[%s249 + $0x8] sm:$0xff] %v872
        %905 = vst [vmem:[%s249 + $0x10] sm:$0xff] %v873
        %906 = vst [vmem:[%s249 + $0x18] sm:$0xff] %v874
        %907 = vst [vmem:[%s249 + $0x20] sm:$0xff] %v875
        %908 = vst [vmem:[%s249 + $0x28] sm:$0xff] %v876
        %909 = vst [vmem:[%s249 + $0x30] sm:$0xff] %v877
        %910 = vst [vmem:[%s249 + $0x38] sm:$0xff] %v878
        %911 = vst [vmem:[%s249 + $0x40] sm:$0xff] %v879
        %912 = vst [vmem:[%s249 + $0x48] sm:$0xff] %v880
        %913 = vst [vmem:[%s249 + $0x50] sm:$0xff] %v881
        %914 = vst [vmem:[%s249 + $0x58] sm:$0xff] %v882
        %915 = vst [vmem:[%s249 + $0x60] sm:$0xff] %v883
        %916 = vst [vmem:[%s249 + $0x68] sm:$0xff] %v884
        %917 = vst [vmem:[%s249 + $0x70] sm:$0xff] %v885
        %918 = vst [vmem:[%s249 + $0x78] sm:$0xff] %v886
        %s919 = sand.u32 %s87, 1
        %s920 = sand.u32 %s87, 1
        %s921 = smul.addr %s920, 128
        %s922 = scalar_lea.vmem [#allocation3], %s921
        // Predicated region
        $region52: #{fpmc_forward.1} parent=46 // pred_check
          %p923 = pneg %p97
        $region53: #{fpmc_forward.1} parent=46 // pred_check_branch
          %925 = sbr.rel (%p923) target = $region55
        $region54: #{fpmc_forward.1} parent=46 // pred_region
          %s926 = smul.u32 2, %s17
          %s927 = smul.u32 16, %s18
          %s928 = smul.addr %s926, 32
          %s929 = sadd.s32 %s927, %s928
          %s930 = smul.addr %s929, 4
          %s931 = scalar_lea.vmem %s2, %s930
          // Predicated region
          $region56: #{fpmc_forward.1} parent=54 // pred_check
            _
          $region57: #{fpmc_forward.1} parent=54 // pred_check_branch
            %933 = sbr.rel (0) target = $region59
          $region58: #{fpmc_forward.1} parent=54 // pred_region
            // Predicated region
            $region60: #{fpmc_forward.1} parent=58 // pred_check
              _
            $region61: #{fpmc_forward.1} parent=58 // pred_check_branch
              %935 = sbr.rel (0) target = $region63
            $region62: #{fpmc_forward.1} parent=58 // pred_region
              loop: start=0, step=1, limit=1
              $region64: #{fpmc_forward.1} parent=62 // loop_pre_header
                _
              $region65: #{fpmc_forward.1} parent=62 // loop_header
                %s937 = sphi 0, %s941
                %p938 = scmp.ge.s32.totalorder %s937, 1
                %s942 = sphi %s922, %s922
                %s943 = sphi %s931, %s931
              $region66: #{fpmc_forward.1} parent=62 // loop_header_branch
                %940 = sbr.rel (%p938) target = $region70
              $region67: #{fpmc_forward.1} parent=62 // loop_body
                %v944 = vld [vmem:[%s942] sm:$0xff]
                %945 = vst [vmem:[%s943] sm:$0xff] %v944
                %v946 = vld [vmem:[%s942 + $0x8] sm:$0xff]
                %947 = vst [vmem:[%s943 + $0x8] sm:$0xff] %v946
                %v948 = vld [vmem:[%s942 + $0x10] sm:$0xff]
                %949 = vst [vmem:[%s943 + $0x10] sm:$0xff] %v948
                %v950 = vld [vmem:[%s942 + $0x18] sm:$0xff]
                %951 = vst [vmem:[%s943 + $0x18] sm:$0xff] %v950
                %v952 = vld [vmem:[%s942 + $0x20] sm:$0xff]
                %953 = vst [vmem:[%s943 + $0x20] sm:$0xff] %v952
                %v954 = vld [vmem:[%s942 + $0x28] sm:$0xff]
                %955 = vst [vmem:[%s943 + $0x28] sm:$0xff] %v954
                %v956 = vld [vmem:[%s942 + $0x30] sm:$0xff]
                %957 = vst [vmem:[%s943 + $0x30] sm:$0xff] %v956
                %v958 = vld [vmem:[%s942 + $0x38] sm:$0xff]
                %959 = vst [vmem:[%s943 + $0x38] sm:$0xff] %v958
                %v960 = vld [vmem:[%s942 + $0x40] sm:$0xff]
                %961 = vst [vmem:[%s943 + $0x80] sm:$0xff] %v960
                %v962 = vld [vmem:[%s942 + $0x48] sm:$0xff]
                %963 = vst [vmem:[%s943 + $0x88] sm:$0xff] %v962
                %v964 = vld [vmem:[%s942 + $0x50] sm:$0xff]
                %965 = vst [vmem:[%s943 + $0x90] sm:$0xff] %v964
                %v966 = vld [vmem:[%s942 + $0x58] sm:$0xff]
                %967 = vst [vmem:[%s943 + $0x98] sm:$0xff] %v966
                %v968 = vld [vmem:[%s942 + $0x60] sm:$0xff]
                %969 = vst [vmem:[%s943 + $0xa0] sm:$0xff] %v968
                %v970 = vld [vmem:[%s942 + $0x68] sm:$0xff]
                %971 = vst [vmem:[%s943 + $0xa8] sm:$0xff] %v970
                %v972 = vld [vmem:[%s942 + $0x70] sm:$0xff]
                %973 = vst [vmem:[%s943 + $0xb0] sm:$0xff] %v972
                %v974 = vld [vmem:[%s942 + $0x78] sm:$0xff]
                %975 = vst [vmem:[%s943 + $0xb8] sm:$0xff] %v974
              $region68: #{fpmc_forward.1} parent=62 // loop_footer
                %s941 = sadd.s32 1, %s937
              $region69: #{fpmc_forward.1} parent=62 // loop_footer_branch
                %936 = sbr.rel target = $region65
              $region70: #{fpmc_forward.1} parent=62 // loop_exit
                _
            $region63: #{fpmc_forward.1} parent=58 // pred_fallthru
              _
            // Predicated region
            $region71: #{fpmc_forward.1} parent=58 // pred_check
              _
            $region72: #{fpmc_forward.1} parent=58 // pred_check_branch
              %977 = sbr.rel target = $region74
            $region73: #{fpmc_forward.1} parent=58 // pred_region
              _
            $region74: #{fpmc_forward.1} parent=58 // pred_fallthru
              _
          $region59: #{fpmc_forward.1} parent=54 // pred_fallthru
            _
          %978 = vnop
        $region55: #{fpmc_forward.1} parent=46 // pred_fallthru
          _
      $region47: #{fpmc_forward.1} parent=5 // pred_fallthru
        _
      %p979 = scmp.le.s32.totalorder 2, %s8
      // Predicated region
      $region75: #{fpmc_forward.1} parent=5 // pred_check
        %p980 = pneg %p979
      $region76: #{fpmc_forward.1} parent=5 // pred_check_branch
        %982 = sbr.rel (%p980) target = $region78
      $region77: #{fpmc_forward.1} parent=5 // pred_region
        %s983 = ssub.s32 %s8, 2
        // Predicated region
        $region79: #{fpmc_forward.1} parent=77 // pred_check
          %p984 = pneg %p103
        $region80: #{fpmc_forward.1} parent=77 // pred_check_branch
          %986 = sbr.rel (%p984) target = $region82
        $region81: #{fpmc_forward.1} parent=77 // pred_region
          %s987 = sand.u32 %s88, 1
          %s988 = sand.u32 %s88, 1
          %s989 = smul.addr %s988, 128
          %s990 = scalar_lea.vmem [#allocation3], %s989
        $region82: #{fpmc_forward.1} parent=77 // pred_fallthru
          _
      $region78: #{fpmc_forward.1} parent=5 // pred_fallthru
        _
    $region6: #{fpmc_forward.1} parent=1 // loop_footer
      %s12 = sadd.s32 1, %s8
    $region7: #{fpmc_forward.1} parent=1 // loop_footer_branch
      %7 = sbr.rel target = $region3
    $region8: #{fpmc_forward.1} parent=1 // loop_exit
      _

</llo_original>
